<compile_context>
chip_gen: v7x
topology: tpu7x:2x2x1
jax: 0.10.0
libtpu: 0.0.40
codegen_flags: <defaults>
</compile_context>

<pallas_src>
import jax
import jax.numpy as jnp
from jax.experimental import pallas as pl
from jax.experimental.pallas import tpu as pltpu

D_IN = 300
D_IN_PAD = 384      # 300 rounded up to a multiple of 128 (lane width)
D_HID = 512
D_OUT = 512


def _mlp_kernel(x_ref, w1_ref, b1_ref, w2_ref, b2_ref, o_ref):
    # fc1: (TM, 384) @ (384, 512) -> f32 accumulate on the MXU, then f32 bias add (VPU).
    h1 = jnp.dot(x_ref[...], w1_ref[...], preferred_element_type=jnp.float32) + b1_ref[...]
    # fc2: cast intermediate to the weight dtype so the MXU runs native bf16 when requested,
    # still accumulating in f32.
    h2 = jnp.dot(h1.astype(w2_ref.dtype), w2_ref[...],
                 preferred_element_type=jnp.float32) + b2_ref[...]
    o_ref[...] = h2.astype(o_ref.dtype)


def _round_up(x, m):
    return (x + m - 1) // m * m


def au_eq_dimension(x, w1, b1, w2, b2, *, compute_dtype=jnp.bfloat16, block_m=256):
    """x: (B, 300); w1: (300, 512); b1: (512,); w2: (512, 512); b2: (512,). Returns (B, 512)."""
    B = x.shape[0]
    out_dtype = x.dtype

    # Batch tile: >=256 rows keeps the MXU busy for large B; otherwise one (8-aligned) tile.
    tm = min(block_m, _round_up(B, 8))
    b_pad = _round_up(B, tm)
    grid_m = b_pad // tm

    # Zero-pad batch + contraction dims and cast to the compute dtype once in the wrapper.
    x_p = jnp.zeros((b_pad, D_IN_PAD), dtype=compute_dtype).at[:B, :D_IN].set(
        x.astype(compute_dtype))
    w1_p = jnp.zeros((D_IN_PAD, D_HID), dtype=compute_dtype).at[:D_IN, :].set(
        w1.astype(compute_dtype))
    w2_c = w2.astype(compute_dtype)
    b1_2d = b1.reshape(1, D_HID).astype(jnp.float32)
    b2_2d = b2.reshape(1, D_OUT).astype(jnp.float32)

    itemsize = jnp.dtype(compute_dtype).itemsize
    bytes_accessed = (x_p.size * itemsize + w1_p.size * itemsize + w2_c.size * itemsize
                      + (b1_2d.size + b2_2d.size) * 4
                      + b_pad * D_OUT * jnp.dtype(out_dtype).itemsize)
    cost = pl.CostEstimate(
        flops=2 * b_pad * (D_IN_PAD * D_HID + D_HID * D_OUT),
        transcendentals=0,
        bytes_accessed=bytes_accessed,
    )

    out = pl.pallas_call(
        _mlp_kernel,
        out_shape=jax.ShapeDtypeStruct((b_pad, D_OUT), out_dtype),
        grid=(grid_m,),
        in_specs=[
            pl.BlockSpec((tm, D_IN_PAD), lambda i: (i, 0)),     # x tile streams
            pl.BlockSpec((D_IN_PAD, D_HID), lambda i: (0, 0)),  # w1 stays VMEM-resident
            pl.BlockSpec((1, D_HID), lambda i: (0, 0)),         # b1 stays VMEM-resident
            pl.BlockSpec((D_HID, D_OUT), lambda i: (0, 0)),     # w2 stays VMEM-resident
            pl.BlockSpec((1, D_OUT), lambda i: (0, 0)),         # b2 stays VMEM-resident
        ],
        out_specs=pl.BlockSpec((tm, D_OUT), lambda i: (i, 0)),
        compiler_params=pltpu.CompilerParams(
            dimension_semantics=("parallel",),       # shard batch tiles across v7x's 2 TCs
            vmem_limit_bytes=32 * 1024 * 1024,       # headroom vs. v7x's 64 MiB physical VMEM
        ),
        cost_estimate=cost,
    )(x_p, w1_p, b1_2d, w2_c, b2_2d)
    return out[:B]


def init_params(key):
    """weights_init: Linear.weight ~ N(0, 0.01), bias = 0 (deterministic via PRNGKey)."""
    k1, k2 = jax.random.split(key, 2)
    # PyTorch nn.Linear stores weight as (out, in); we keep the transposed (in, out)
    # layout so the kernel computes x @ W == x @ weight.T (same math).
    w1 = jax.random.normal(k1, (D_IN, D_HID), dtype=jnp.float32) * 0.01
    b1 = jnp.zeros((D_HID,), dtype=jnp.float32)
    w2 = jax.random.normal(k2, (D_HID, D_OUT), dtype=jnp.float32) * 0.01
    b2 = jnp.zeros((D_OUT,), dtype=jnp.float32)
    return w1, b1, w2, b2


if __name__ == "__main__":
    key = jax.random.PRNGKey(0)
    kx, kp = jax.random.split(key)
    w1, b1, w2, b2 = init_params(kp)

    # Case 1: small batch, exact-semantics f32 path (tight tolerance).
    B = 8
    x = jax.random.normal(kx, (B, D_IN), dtype=jnp.float32)
    ref = (x @ w1 + b1) @ w2 + b2

    out_f32 = au_eq_dimension(x, w1, b1, w2, b2, compute_dtype=jnp.float32)
    jax.block_until_ready(out_f32)
    assert out_f32.shape == (B, D_OUT)
    assert jnp.allclose(out_f32, ref, atol=1e-4, rtol=1e-4)

    # Case 2: default bf16-weight path (halved HBM traffic; f32 accumulation) — looser tolerance.
    out_bf16 = au_eq_dimension(x, w1, b1, w2, b2)
    jax.block_until_ready(out_bf16)
    assert jnp.allclose(out_bf16, ref, atol=5e-3, rtol=5e-2)

    # Case 3: exercise the batch grid + padding (B not a multiple of the tile).
    B2 = 40
    x2 = jax.random.normal(jax.random.fold_in(kx, 1), (B2, D_IN), dtype=jnp.float32)
    ref2 = (x2 @ w1 + b1) @ w2 + b2
    out2 = au_eq_dimension(x2, w1, b1, w2, b2, block_m=16)   # grid of 3 tiles, padded batch
    jax.block_until_ready(out2)
    assert out2.shape == (B2, D_OUT)
    assert jnp.allclose(out2, ref2, atol=5e-3, rtol=5e-2)

    print("KERNEL_OK")
</pallas_src>

<mosaic_0001>
module attributes {stable_mosaic.version = 11 : i64} {
  func.func @_mlp_kernel(%arg0: i32, %arg1: memref<8x384xf32, #tpu.memory_space<vmem>>, %arg2: memref<384x512xf32, #tpu.memory_space<vmem>>, %arg3: memref<1x512xf32, #tpu.memory_space<vmem>>, %arg4: memref<512x512xf32, #tpu.memory_space<vmem>>, %arg5: memref<1x512xf32, #tpu.memory_space<vmem>>, %arg6: memref<8x512xf32, #tpu.memory_space<vmem>>) attributes {dimension_semantics = [#tpu.dimension_semantics<parallel>], iteration_bounds = array<i64: 1>, scalar_prefetch = 0 : i64, scratch_operands = 0 : i64, tpu.core_type = #tpu.core_type<tc>, window_params = [{transform_indices = @transform_0, window_bounds = array<i64: 8, 384>}, {pipeline_mode = #tpu.pipeline_mode<synchronous>, transform_indices = @transform_1, window_bounds = array<i64: 384, 512>}, {pipeline_mode = #tpu.pipeline_mode<synchronous>, transform_indices = @transform_2, window_bounds = array<i64: 1, 512>}, {pipeline_mode = #tpu.pipeline_mode<synchronous>, transform_indices = @transform_3, window_bounds = array<i64: 512, 512>}, {pipeline_mode = #tpu.pipeline_mode<synchronous>, transform_indices = @transform_4, window_bounds = array<i64: 1, 512>}, {transform_indices = @transform_5, window_bounds = array<i64: 8, 512>}]} {
    %c0 = arith.constant 0 : index
    %c0_0 = arith.constant 0 : index
    %0 = vector.load %arg1[%c0, %c0_0] : memref<8x384xf32, #tpu.memory_space<vmem>>, vector<8x384xf32>
    %c0_1 = arith.constant 0 : index
    %c0_2 = arith.constant 0 : index
    %1 = vector.load %arg2[%c0_1, %c0_2] : memref<384x512xf32, #tpu.memory_space<vmem>>, vector<384x512xf32>
    %cst = arith.constant dense<0.000000e+00> : vector<8x512xf32>
    %2 = tpu.matmul %0, %1, %cst {dimension_numbers = #tpu.dot_dimension_numbers<[1], [0], [0], [1], [0, 0, 1, 1], [], []>} : vector<8x384xf32>, vector<384x512xf32>, vector<8x512xf32> -> vector<8x512xf32>
    %c0_3 = arith.constant 0 : index
    %c0_4 = arith.constant 0 : index
    %3 = vector.load %arg3[%c0_3, %c0_4] : memref<1x512xf32, #tpu.memory_space<vmem>>, vector<1x512xf32>
    %4 = vector.broadcast %3 : vector<1x512xf32> to vector<8x512xf32>
    %5 = arith.addf %2, %4 : vector<8x512xf32>
    %c0_5 = arith.constant 0 : index
    %c0_6 = arith.constant 0 : index
    %6 = vector.load %arg4[%c0_5, %c0_6] : memref<512x512xf32, #tpu.memory_space<vmem>>, vector<512x512xf32>
    %cst_7 = arith.constant dense<0.000000e+00> : vector<8x512xf32>
    %7 = tpu.matmul %5, %6, %cst_7 {dimension_numbers = #tpu.dot_dimension_numbers<[1], [0], [0], [1], [0, 0, 1, 1], [], []>} : vector<8x512xf32>, vector<512x512xf32>, vector<8x512xf32> -> vector<8x512xf32>
    %c0_8 = arith.constant 0 : index
    %c0_9 = arith.constant 0 : index
    %8 = vector.load %arg5[%c0_8, %c0_9] : memref<1x512xf32, #tpu.memory_space<vmem>>, vector<1x512xf32>
    %9 = vector.broadcast %8 : vector<1x512xf32> to vector<8x512xf32>
    %10 = arith.addf %7, %9 : vector<8x512xf32>
    %c0_10 = arith.constant 0 : index
    %c0_11 = arith.constant 0 : index
    %11 = vector.load %arg6[%c0_10, %c0_11] : memref<8x512xf32, #tpu.memory_space<vmem>>, vector<8x512xf32>
    tpu.vector_store %arg6[%c0_10, %c0_11], %10 {strides = array<i32>} : memref<8x512xf32, #tpu.memory_space<vmem>>, vector<8x512xf32>,
    return
  }
  func.func @transform_0(%arg0: i32) -> (i32, i32) {
    %c0_i32 = arith.constant 0 : i32
    %c0_i32_0 = arith.constant 0 : i32
    return %arg0, %c0_i32 : i32, i32
  }
  func.func @transform_1(%arg0: i32) -> (i32, i32) {
    %c0_i32 = arith.constant 0 : i32
    %c0_i32_0 = arith.constant 0 : i32
    %c0_i32_1 = arith.constant 0 : i32
    return %c0_i32, %c0_i32_0 : i32, i32
  }
  func.func @transform_2(%arg0: i32) -> (i32, i32) {
    %c0_i32 = arith.constant 0 : i32
    %c0_i32_0 = arith.constant 0 : i32
    %c0_i32_1 = arith.constant 0 : i32
    return %c0_i32, %c0_i32_0 : i32, i32
  }
  func.func @transform_3(%arg0: i32) -> (i32, i32) {
    %c0_i32 = arith.constant 0 : i32
    %c0_i32_0 = arith.constant 0 : i32
    %c0_i32_1 = arith.constant 0 : i32
    return %c0_i32, %c0_i32_0 : i32, i32
  }
  func.func @transform_4(%arg0: i32) -> (i32, i32) {
    %c0_i32 = arith.constant 0 : i32
    %c0_i32_0 = arith.constant 0 : i32
    %c0_i32_1 = arith.constant 0 : i32
    return %c0_i32, %c0_i32_0 : i32, i32
  }
  func.func @transform_5(%arg0: i32) -> (i32, i32) {
    %c0_i32 = arith.constant 0 : i32
    %c0_i32_0 = arith.constant 0 : i32
    return %arg0, %c0_i32 : i32, i32
  }
}

</mosaic_0001>

<llo_original>
// kernel: tpu_custom_call.1
$region0: #{tpu_custom_call.1}
  #allocation0 [shape = 'u32[]', space=smem, size = 0x4, offset = 0x4, fixed_abs, tag = 'smem constant byte address 0x4 - core index']
  #allocation1 [shape = 'u32[144,128]{1,0:T(1,128)}', space=vmem, size = 0x12000, scoped, tag = 'internal scratch']
  %s0 = inlined_call_operand.hbm [shape: f32[8,384], index: 0, kind: input, shape index: {}]
  %s1 = inlined_call_operand.hbm [shape: f32[384,512], index: 1, kind: input, shape index: {}]
  %s2 = inlined_call_operand.vmem [shape: f32[1,512], index: 2, kind: input, shape index: {}]
  %s3 = inlined_call_operand.hbm [shape: f32[512,512], index: 3, kind: input, shape index: {}]
  %s4 = inlined_call_operand.vmem [shape: f32[1,512], index: 4, kind: input, shape index: {}]
  %s5 = inlined_call_operand.hbm [shape: f32[8,512], index: 5, kind: output, shape index: {}]
  %s6 = sld [smem:[#allocation0]]
  $region42: #{tpu_custom_call.1} parent=0
    _
  %s8 = ssub.s32 1, %s6
  %s9 = scalar_select 0, %s8, %s6
  $region1: #{tpu_custom_call.1} parent=0
    #allocation2 [shape = 'u8[12288]{0}', space=vmem, size = 0x3000, scoped, tag = 'input window, operand 0, single buffered']
    #allocation3 [shape = 's32[1]{0}', space=sflag, size = 0x4, scoped, tag = 'scoped memory for tpu_custom_call.1']
    #allocation4 [shape = 's32[1]{0}', space=sflag, size = 0x4, scoped, tag = 'scoped memory for tpu_custom_call.1']
    #allocation5 [shape = 'u8[786432]{0}', space=vmem, size = 0xc0000, scoped, tag = 'input window, operand 1, single buffered']
    #allocation6 [shape = 's32[1]{0}', space=sflag, size = 0x4, scoped, tag = 'scoped memory for tpu_custom_call.1']
    #allocation7 [shape = 'u8[1048576]{0}', space=vmem, size = 0x100000, scoped, tag = 'input window, operand 3, single buffered']
    #allocation8 [shape = 'u8[16384]{0}', space=vmem, size = 0x4000, scoped, tag = 'output window, operand 0, single buffered']
    %10 = vsyncpa [#allocation3], 0
    %11 = vsyncpa [#allocation6], 0
    %12 = vsyncpa [#allocation4], 0
    // Predicated region
    $region2: #{tpu_custom_call.1} parent=1 // pred_check
      _
    $region3: #{tpu_custom_call.1} parent=1 // pred_check_branch
      %14 = sbr.rel (0) target = $region5
    $region4: #{tpu_custom_call.1} parent=1 // pred_region
      %s16 = ssub.s32 384, 384
      %17 = vsyncadd [#allocation3], %s16
      %s19 = sshll.u32 [#allocation2], 4
      %s20 = int_to_ptr.vmem [resolvable:$true] %s19
      %22 = dma.hbm_to_vmem [thread:$0]  %s0, 384, %s20, [#allocation3]
    $region5: #{tpu_custom_call.1} parent=1 // pred_fallthru
      _
    // Predicated region
    $region6: #{tpu_custom_call.1} parent=1 // pred_check
      _
    $region7: #{tpu_custom_call.1} parent=1 // pred_check_branch
      %24 = sbr.rel (0) target = $region9
    $region8: #{tpu_custom_call.1} parent=1 // pred_region
      %s26 = ssub.s32 24576, 24576
      %27 = vsyncadd [#allocation6], %s26
      %s28 = sshll.u32 [#allocation5], 4
      %s29 = int_to_ptr.vmem [resolvable:$true] %s28
      %34 = dma.hbm_to_vmem [thread:$0]  %s1, 24576, %s29, [#allocation6], 512, 512, 32
    $region9: #{tpu_custom_call.1} parent=1 // pred_fallthru
      _
    // Predicated region
    $region10: #{tpu_custom_call.1} parent=1 // pred_check
      _
    $region11: #{tpu_custom_call.1} parent=1 // pred_check_branch
      %36 = sbr.rel (0) target = $region13
    $region12: #{tpu_custom_call.1} parent=1 // pred_region
      _
    $region13: #{tpu_custom_call.1} parent=1 // pred_fallthru
      _
    // Predicated region
    $region14: #{tpu_custom_call.1} parent=1 // pred_check
      _
    $region15: #{tpu_custom_call.1} parent=1 // pred_check_branch
      %38 = sbr.rel (0) target = $region17
    $region16: #{tpu_custom_call.1} parent=1 // pred_region
      %s40 = ssub.s32 32768, 32768
      %41 = vsyncadd [#allocation6], %s40
      %s42 = sshll.u32 [#allocation7], 4
      %s43 = int_to_ptr.vmem [resolvable:$true] %s42
      %48 = dma.hbm_to_vmem [thread:$0]  %s3, 32768, %s43, [#allocation6], 512, 512, 32
    $region17: #{tpu_custom_call.1} parent=1 // pred_fallthru
      _
    // Predicated region
    $region18: #{tpu_custom_call.1} parent=1 // pred_check
      _
    $region19: #{tpu_custom_call.1} parent=1 // pred_check_branch
      %50 = sbr.rel (0) target = $region21
    $region20: #{tpu_custom_call.1} parent=1 // pred_region
      _
    $region21: #{tpu_custom_call.1} parent=1 // pred_fallthru
      _
    // Predicated region
    $region22: #{tpu_custom_call.1} parent=1 // pred_check
      _
    $region23: #{tpu_custom_call.1} parent=1 // pred_check_branch
      %52 = sbr.rel (0) target = $region25
    $region24: #{tpu_custom_call.1} parent=1 // pred_region
      %53 = dma.done [#allocation3], 384
    $region25: #{tpu_custom_call.1} parent=1 // pred_fallthru
      _
    // Predicated region
    $region26: #{tpu_custom_call.1} parent=1 // pred_check
      _
    $region27: #{tpu_custom_call.1} parent=1 // pred_check_branch
      %55 = sbr.rel (0) target = $region29
    $region28: #{tpu_custom_call.1} parent=1 // pred_region
      %56 = dma.done [#allocation6], 24576
    $region29: #{tpu_custom_call.1} parent=1 // pred_fallthru
      _
    // Predicated region
    $region30: #{tpu_custom_call.1} parent=1 // pred_check
      _
    $region31: #{tpu_custom_call.1} parent=1 // pred_check_branch
      %58 = sbr.rel (0) target = $region33
    $region32: #{tpu_custom_call.1} parent=1 // pred_region
      %59 = dma.done [#allocation6], 32768
    $region33: #{tpu_custom_call.1} parent=1 // pred_fallthru
      _
    %v60 = vld [vmem:[#allocation2] sm:$0xff]
    %v61 = vld [vmem:[#allocation2 + $0x8] sm:$0xff]
    %v62 = vld [vmem:[#allocation2 + $0x10] sm:$0xff]
    %v63 = vld [vmem:[#allocation5] sm:$0xff]
    %v64 = vld [vmem:[#allocation5 + $0x8] sm:$0xff]
    %v65 = vld [vmem:[#allocation5 + $0x10] sm:$0xff]
    %v66 = vld [vmem:[#allocation5 + $0x18] sm:$0xff]
    %v67 = vld [vmem:[#allocation5 + $0x20] sm:$0xff]
    %v68 = vld [vmem:[#allocation5 + $0x28] sm:$0xff]
    %v69 = vld [vmem:[#allocation5 + $0x30] sm:$0xff]
    %v70 = vld [vmem:[#allocation5 + $0x38] sm:$0xff]
    %v71 = vld [vmem:[#allocation5 + $0x40] sm:$0xff]
    %v72 = vld [vmem:[#allocation5 + $0x48] sm:$0xff]
    %v73 = vld [vmem:[#allocation5 + $0x50] sm:$0xff]
    %v74 = vld [vmem:[#allocation5 + $0x58] sm:$0xff]
    %v75 = vld [vmem:[#allocation5 + $0x60] sm:$0xff]
    %v76 = vld [vmem:[#allocation5 + $0x68] sm:$0xff]
    %v77 = vld [vmem:[#allocation5 + $0x70] sm:$0xff]
    %v78 = vld [vmem:[#allocation5 + $0x78] sm:$0xff]
    %v79 = vld [vmem:[#allocation5 + $0x80] sm:$0xff]
    %v80 = vld [vmem:[#allocation5 + $0x88] sm:$0xff]
    %v81 = vld [vmem:[#allocation5 + $0x90] sm:$0xff]
    %v82 = vld [vmem:[#allocation5 + $0x98] sm:$0xff]
    %v83 = vld [vmem:[#allocation5 + $0xa0] sm:$0xff]
    %v84 = vld [vmem:[#allocation5 + $0xa8] sm:$0xff]
    %v85 = vld [vmem:[#allocation5 + $0xb0] sm:$0xff]
    %v86 = vld [vmem:[#allocation5 + $0xb8] sm:$0xff]
    %v87 = vld [vmem:[#allocation5 + $0xc0] sm:$0xff]
    %v88 = vld [vmem:[#allocation5 + $0xc8] sm:$0xff]
    %v89 = vld [vmem:[#allocation5 + $0xd0] sm:$0xff]
    %v90 = vld [vmem:[#allocation5 + $0xd8] sm:$0xff]
    %v91 = vld [vmem:[#allocation5 + $0xe0] sm:$0xff]
    %v92 = vld [vmem:[#allocation5 + $0xe8] sm:$0xff]
    %v93 = vld [vmem:[#allocation5 + $0xf0] sm:$0xff]
    %v94 = vld [vmem:[#allocation5 + $0xf8] sm:$0xff]
    %v95 = vld [vmem:[#allocation5 + $0x100] sm:$0xff]
    %v96 = vld [vmem:[#allocation5 + $0x108] sm:$0xff]
    %v97 = vld [vmem:[#allocation5 + $0x110] sm:$0xff]
    %v98 = vld [vmem:[#allocation5 + $0x118] sm:$0xff]
    %v99 = vld [vmem:[#allocation5 + $0x120] sm:$0xff]
    %v100 = vld [vmem:[#allocation5 + $0x128] sm:$0xff]
    %v101 = vld [vmem:[#allocation5 + $0x130] sm:$0xff]
    %v102 = vld [vmem:[#allocation5 + $0x138] sm:$0xff]
    %v103 = vld [vmem:[#allocation5 + $0x140] sm:$0xff]
    %v104 = vld [vmem:[#allocation5 + $0x148] sm:$0xff]
    %v105 = vld [vmem:[#allocation5 + $0x150] sm:$0xff]
    %v106 = vld [vmem:[#allocation5 + $0x158] sm:$0xff]
    %v107 = vld [vmem:[#allocation5 + $0x160] sm:$0xff]
    %v108 = vld [vmem:[#allocation5 + $0x168] sm:$0xff]
    %v109 = vld [vmem:[#allocation5 + $0x170] sm:$0xff]
    %v110 = vld [vmem:[#allocation5 + $0x178] sm:$0xff]
    %v111 = vld [vmem:[#allocation5 + $0x180] sm:$0xff]
    %v112 = vld [vmem:[#allocation5 + $0x188] sm:$0xff]
    %v113 = vld [vmem:[#allocation5 + $0x190] sm:$0xff]
    %v114 = vld [vmem:[#allocation5 + $0x198] sm:$0xff]
    %v115 = vld [vmem:[#allocation5 + $0x1a0] sm:$0xff]
    %v116 = vld [vmem:[#allocation5 + $0x1a8] sm:$0xff]
    %v117 = vld [vmem:[#allocation5 + $0x1b0] sm:$0xff]
    %v118 = vld [vmem:[#allocation5 + $0x1b8] sm:$0xff]
    %v119 = vld [vmem:[#allocation5 + $0x1c0] sm:$0xff]
    %v120 = vld [vmem:[#allocation5 + $0x1c8] sm:$0xff]
    %v121 = vld [vmem:[#allocation5 + $0x1d0] sm:$0xff]
    %v122 = vld [vmem:[#allocation5 + $0x1d8] sm:$0xff]
    %v123 = vld [vmem:[#allocation5 + $0x1e0] sm:$0xff]
    %v124 = vld [vmem:[#allocation5 + $0x1e8] sm:$0xff]
    %v125 = vld [vmem:[#allocation5 + $0x1f0] sm:$0xff]
    %v126 = vld [vmem:[#allocation5 + $0x1f8] sm:$0xff]
    %v127 = vld [vmem:[#allocation5 + $0x200] sm:$0xff]
    %v128 = vld [vmem:[#allocation5 + $0x208] sm:$0xff]
    %v129 = vld [vmem:[#allocation5 + $0x210] sm:$0xff]
    %v130 = vld [vmem:[#allocation5 + $0x218] sm:$0xff]
    %v131 = vld [vmem:[#allocation5 + $0x220] sm:$0xff]
    %v132 = vld [vmem:[#allocation5 + $0x228] sm:$0xff]
    %v133 = vld [vmem:[#allocation5 + $0x230] sm:$0xff]
    %v134 = vld [vmem:[#allocation5 + $0x238] sm:$0xff]
    %v135 = vld [vmem:[#allocation5 + $0x240] sm:$0xff]
    %v136 = vld [vmem:[#allocation5 + $0x248] sm:$0xff]
    %v137 = vld [vmem:[#allocation5 + $0x250] sm:$0xff]
    %v138 = vld [vmem:[#allocation5 + $0x258] sm:$0xff]
    %v139 = vld [vmem:[#allocation5 + $0x260] sm:$0xff]
    %v140 = vld [vmem:[#allocation5 + $0x268] sm:$0xff]
    %v141 = vld [vmem:[#allocation5 + $0x270] sm:$0xff]
    %v142 = vld [vmem:[#allocation5 + $0x278] sm:$0xff]
    %v143 = vld [vmem:[#allocation5 + $0x280] sm:$0xff]
    %v144 = vld [vmem:[#allocation5 + $0x288] sm:$0xff]
    %v145 = vld [vmem:[#allocation5 + $0x290] sm:$0xff]
    %v146 = vld [vmem:[#allocation5 + $0x298] sm:$0xff]
    %v147 = vld [vmem:[#allocation5 + $0x2a0] sm:$0xff]
    %v148 = vld [vmem:[#allocation5 + $0x2a8] sm:$0xff]
    %v149 = vld [vmem:[#allocation5 + $0x2b0] sm:$0xff]
    %v150 = vld [vmem:[#allocation5 + $0x2b8] sm:$0xff]
    %v151 = vld [vmem:[#allocation5 + $0x2c0] sm:$0xff]
    %v152 = vld [vmem:[#allocation5 + $0x2c8] sm:$0xff]
    %v153 = vld [vmem:[#allocation5 + $0x2d0] sm:$0xff]
    %v154 = vld [vmem:[#allocation5 + $0x2d8] sm:$0xff]
    %v155 = vld [vmem:[#allocation5 + $0x2e0] sm:$0xff]
    %v156 = vld [vmem:[#allocation5 + $0x2e8] sm:$0xff]
    %v157 = vld [vmem:[#allocation5 + $0x2f0] sm:$0xff]
    %v158 = vld [vmem:[#allocation5 + $0x2f8] sm:$0xff]
    %v159 = vld [vmem:[#allocation5 + $0x300] sm:$0xff]
    %v160 = vld [vmem:[#allocation5 + $0x308] sm:$0xff]
    %v161 = vld [vmem:[#allocation5 + $0x310] sm:$0xff]
    %v162 = vld [vmem:[#allocation5 + $0x318] sm:$0xff]
    %v163 = vld [vmem:[#allocation5 + $0x320] sm:$0xff]
    %v164 = vld [vmem:[#allocation5 + $0x328] sm:$0xff]
    %v165 = vld [vmem:[#allocation5 + $0x330] sm:$0xff]
    %v166 = vld [vmem:[#allocation5 + $0x338] sm:$0xff]
    %v167 = vld [vmem:[#allocation5 + $0x340] sm:$0xff]
    %v168 = vld [vmem:[#allocation5 + $0x348] sm:$0xff]
    %v169 = vld [vmem:[#allocation5 + $0x350] sm:$0xff]
    %v170 = vld [vmem:[#allocation5 + $0x358] sm:$0xff]
    %v171 = vld [vmem:[#allocation5 + $0x360] sm:$0xff]
    %v172 = vld [vmem:[#allocation5 + $0x368] sm:$0xff]
    %v173 = vld [vmem:[#allocation5 + $0x370] sm:$0xff]
    %v174 = vld [vmem:[#allocation5 + $0x378] sm:$0xff]
    %v175 = vld [vmem:[#allocation5 + $0x380] sm:$0xff]
    %v176 = vld [vmem:[#allocation5 + $0x388] sm:$0xff]
    %v177 = vld [vmem:[#allocation5 + $0x390] sm:$0xff]
    %v178 = vld [vmem:[#allocation5 + $0x398] sm:$0xff]
    %v179 = vld [vmem:[#allocation5 + $0x3a0] sm:$0xff]
    %v180 = vld [vmem:[#allocation5 + $0x3a8] sm:$0xff]
    %v181 = vld [vmem:[#allocation5 + $0x3b0] sm:$0xff]
    %v182 = vld [vmem:[#allocation5 + $0x3b8] sm:$0xff]
    %v183 = vld [vmem:[#allocation5 + $0x3c0] sm:$0xff]
    %v184 = vld [vmem:[#allocation5 + $0x3c8] sm:$0xff]
    %v185 = vld [vmem:[#allocation5 + $0x3d0] sm:$0xff]
    %v186 = vld [vmem:[#allocation5 + $0x3d8] sm:$0xff]
    %v187 = vld [vmem:[#allocation5 + $0x3e0] sm:$0xff]
    %v188 = vld [vmem:[#allocation5 + $0x3e8] sm:$0xff]
    %v189 = vld [vmem:[#allocation5 + $0x3f0] sm:$0xff]
    %v190 = vld [vmem:[#allocation5 + $0x3f8] sm:$0xff]
    %v191 = vld [vmem:[#allocation5 + $0x400] sm:$0xff]
    %v192 = vld [vmem:[#allocation5 + $0x408] sm:$0xff]
    %v193 = vld [vmem:[#allocation5 + $0x410] sm:$0xff]
    %v194 = vld [vmem:[#allocation5 + $0x418] sm:$0xff]
    %v195 = vld [vmem:[#allocation5 + $0x420] sm:$0xff]
    %v196 = vld [vmem:[#allocation5 + $0x428] sm:$0xff]
    %v197 = vld [vmem:[#allocation5 + $0x430] sm:$0xff]
    %v198 = vld [vmem:[#allocation5 + $0x438] sm:$0xff]
    %v199 = vld [vmem:[#allocation5 + $0x440] sm:$0xff]
    %v200 = vld [vmem:[#allocation5 + $0x448] sm:$0xff]
    %v201 = vld [vmem:[#allocation5 + $0x450] sm:$0xff]
    %v202 = vld [vmem:[#allocation5 + $0x458] sm:$0xff]
    %v203 = vld [vmem:[#allocation5 + $0x460] sm:$0xff]
    %v204 = vld [vmem:[#allocation5 + $0x468] sm:$0xff]
    %v205 = vld [vmem:[#allocation5 + $0x470] sm:$0xff]
    %v206 = vld [vmem:[#allocation5 + $0x478] sm:$0xff]
    %v207 = vld [vmem:[#allocation5 + $0x480] sm:$0xff]
    %v208 = vld [vmem:[#allocation5 + $0x488] sm:$0xff]
    %v209 = vld [vmem:[#allocation5 + $0x490] sm:$0xff]
    %v210 = vld [vmem:[#allocation5 + $0x498] sm:$0xff]
    %v211 = vld [vmem:[#allocation5 + $0x4a0] sm:$0xff]
    %v212 = vld [vmem:[#allocation5 + $0x4a8] sm:$0xff]
    %v213 = vld [vmem:[#allocation5 + $0x4b0] sm:$0xff]
    %v214 = vld [vmem:[#allocation5 + $0x4b8] sm:$0xff]
    %v215 = vld [vmem:[#allocation5 + $0x4c0] sm:$0xff]
    %v216 = vld [vmem:[#allocation5 + $0x4c8] sm:$0xff]
    %v217 = vld [vmem:[#allocation5 + $0x4d0] sm:$0xff]
    %v218 = vld [vmem:[#allocation5 + $0x4d8] sm:$0xff]
    %v219 = vld [vmem:[#allocation5 + $0x4e0] sm:$0xff]
    %v220 = vld [vmem:[#allocation5 + $0x4e8] sm:$0xff]
    %v221 = vld [vmem:[#allocation5 + $0x4f0] sm:$0xff]
    %v222 = vld [vmem:[#allocation5 + $0x4f8] sm:$0xff]
    %v223 = vld [vmem:[#allocation5 + $0x500] sm:$0xff]
    %v224 = vld [vmem:[#allocation5 + $0x508] sm:$0xff]
    %v225 = vld [vmem:[#allocation5 + $0x510] sm:$0xff]
    %v226 = vld [vmem:[#allocation5 + $0x518] sm:$0xff]
    %v227 = vld [vmem:[#allocation5 + $0x520] sm:$0xff]
    %v228 = vld [vmem:[#allocation5 + $0x528] sm:$0xff]
    %v229 = vld [vmem:[#allocation5 + $0x530] sm:$0xff]
    %v230 = vld [vmem:[#allocation5 + $0x538] sm:$0xff]
    %v231 = vld [vmem:[#allocation5 + $0x540] sm:$0xff]
    %v232 = vld [vmem:[#allocation5 + $0x548] sm:$0xff]
    %v233 = vld [vmem:[#allocation5 + $0x550] sm:$0xff]
    %v234 = vld [vmem:[#allocation5 + $0x558] sm:$0xff]
    %v235 = vld [vmem:[#allocation5 + $0x560] sm:$0xff]
    %v236 = vld [vmem:[#allocation5 + $0x568] sm:$0xff]
    %v237 = vld [vmem:[#allocation5 + $0x570] sm:$0xff]
    %v238 = vld [vmem:[#allocation5 + $0x578] sm:$0xff]
    %v239 = vld [vmem:[#allocation5 + $0x580] sm:$0xff]
    %v240 = vld [vmem:[#allocation5 + $0x588] sm:$0xff]
    %v241 = vld [vmem:[#allocation5 + $0x590] sm:$0xff]
    %v242 = vld [vmem:[#allocation5 + $0x598] sm:$0xff]
    %v243 = vld [vmem:[#allocation5 + $0x5a0] sm:$0xff]
    %v244 = vld [vmem:[#allocation5 + $0x5a8] sm:$0xff]
    %v245 = vld [vmem:[#allocation5 + $0x5b0] sm:$0xff]
    %v246 = vld [vmem:[#allocation5 + $0x5b8] sm:$0xff]
    %v247 = vld [vmem:[#allocation5 + $0x5c0] sm:$0xff]
    %v248 = vld [vmem:[#allocation5 + $0x5c8] sm:$0xff]
    %v249 = vld [vmem:[#allocation5 + $0x5d0] sm:$0xff]
    %v250 = vld [vmem:[#allocation5 + $0x5d8] sm:$0xff]
    %v251 = vld [vmem:[#allocation5 + $0x5e0] sm:$0xff]
    %v252 = vld [vmem:[#allocation5 + $0x5e8] sm:$0xff]
    %v253 = vld [vmem:[#allocation5 + $0x5f0] sm:$0xff]
    %v254 = vld [vmem:[#allocation5 + $0x5f8] sm:$0xff]
    %v255 = vld [vmem:[%s2] sm:$0xf]
    %v257 = vlaneseq
    %v258 = vshrl.u32 %v257, 7
    %v259 = vsub.s32 0, %v258
    %v260 = vrot.slane %v255, %v259
    %v261 = vlaneseq
    %v262 = vshrl.u32 %v261, 7
    %v263 = vsub.s32 1, %v262
    %v264 = vrot.slane %v255, %v263
    %v265 = vlaneseq
    %v266 = vshrl.u32 %v265, 7
    %v267 = vsub.s32 2, %v266
    %v268 = vrot.slane %v255, %v267
    %v269 = vlaneseq
    %v270 = vshrl.u32 %v269, 7
    %v271 = vsub.s32 3, %v270
    %v272 = vrot.slane %v255, %v271
    %277 = vmatprep.subr.mxu0 %v64
    %278 = vmatpush1.msra.mxu0 %v63
    %279 = vmatprep.subr.mxu0 %v68
    %280 = vmatpush1.msra.mxu0 %v67
    %281 = vmatprep.subr.mxu0 %v72
    %282 = vmatpush1.msra.mxu0 %v71
    %283 = vmatprep.subr.mxu0 %v76
    %284 = vmatpush1.msra.mxu0 %v75
    %285 = vmatprep.subr.mxu0 %v80
    %286 = vmatpush1.msra.mxu0 %v79
    %287 = vmatprep.subr.mxu0 %v84
    %288 = vmatpush1.msra.mxu0 %v83
    %289 = vmatprep.subr.mxu0 %v88
    %290 = vmatpush1.msra.mxu0 %v87
    %291 = vmatprep.subr.mxu0 %v92
    %292 = vmatpush1.msra.mxu0 %v91
    %293 = vmatprep.subr.mxu0 %v96
    %294 = vmatpush1.msra.mxu0 %v95
    %295 = vmatprep.subr.mxu0 %v100
    %296 = vmatpush1.msra.mxu0 %v99
    %297 = vmatprep.subr.mxu0 %v104
    %298 = vmatpush1.msra.mxu0 %v103
    %299 = vmatprep.subr.mxu0 %v108
    %300 = vmatpush1.msra.mxu0 %v107
    %301 = vmatprep.subr.mxu0 %v112
    %302 = vmatpush1.msra.mxu0 %v111
    %303 = vmatprep.subr.mxu0 %v116
    %304 = vmatpush1.msra.mxu0 %v115
    %305 = vmatprep.subr.mxu0 %v120
    %306 = vmatpush1.msra.mxu0 %v119
    %307 = vmatprep.subr.mxu0 %v124
    %308 = vmatpush1.msra.mxu0 %v123
    %309 = vmatprep.subr.mxu0 %v128
    %310 = vmatpush1.msra.mxu0 %v127
    %311 = vmatprep.subr.mxu0 %v132
    %312 = vmatpush1.msra.mxu0 %v131
    %313 = vmatprep.subr.mxu0 %v136
    %314 = vmatpush1.msra.mxu0 %v135
    %315 = vmatprep.subr.mxu0 %v140
    %316 = vmatpush1.msra.mxu0 %v139
    %317 = vmatprep.subr.mxu0 %v144
    %318 = vmatpush1.msra.mxu0 %v143
    %319 = vmatprep.subr.mxu0 %v148
    %320 = vmatpush1.msra.mxu0 %v147
    %321 = vmatprep.subr.mxu0 %v152
    %322 = vmatpush1.msra.mxu0 %v151
    %323 = vmatprep.subr.mxu0 %v156
    %324 = vmatpush1.msra.mxu0 %v155
    %325 = vmatprep.subr.mxu0 %v160
    %326 = vmatpush1.msra.mxu0 %v159
    %327 = vmatprep.subr.mxu0 %v164
    %328 = vmatpush1.msra.mxu0 %v163
    %329 = vmatprep.subr.mxu0 %v168
    %330 = vmatpush1.msra.mxu0 %v167
    %331 = vmatprep.subr.mxu0 %v172
    %332 = vmatpush1.msra.mxu0 %v171
    %333 = vmatprep.subr.mxu0 %v176
    %334 = vmatpush1.msra.mxu0 %v175
    %335 = vmatprep.subr.mxu0 %v180
    %336 = vmatpush1.msra.mxu0 %v179
    %337 = vmatprep.subr.mxu0 %v184
    %338 = vmatpush1.msra.mxu0 %v183
    %339 = vmatprep.subr.mxu0 %v188
    %340 = vmatpush1.msra.mxu0 %v187
    %341 = vmatprep.mubr.f32.mxu0 %v61
    %342 = vmatmul.mubr.f32.gmra.mrb[0].mxu0 %v60
    %v343 = vpop.f32.mrb[0].mxu0
    %v344 = vadd.f32 %v260, %v343
    %v345 = vpop.f32.mrb[0].mxu0
    %v346 = vadd.f32 %v264, %v345
    %347 = vdwg.mxu0
    %348 = vmatprep.subr.mxu0 %v192
    %349 = vmatpush1.msra.mxu0 %v191
    %350 = vmatprep.subr.mxu0 %v196
    %351 = vmatpush1.msra.mxu0 %v195
    %352 = vmatprep.subr.mxu0 %v200
    %353 = vmatpush1.msra.mxu0 %v199
    %354 = vmatprep.subr.mxu0 %v204
    %355 = vmatpush1.msra.mxu0 %v203
    %356 = vmatprep.subr.mxu0 %v208
    %357 = vmatpush1.msra.mxu0 %v207
    %358 = vmatprep.subr.mxu0 %v212
    %359 = vmatpush1.msra.mxu0 %v211
    %360 = vmatprep.subr.mxu0 %v216
    %361 = vmatpush1.msra.mxu0 %v215
    %362 = vmatprep.subr.mxu0 %v220
    %363 = vmatpush1.msra.mxu0 %v219
    %364 = vmatprep.subr.mxu0 %v224
    %365 = vmatpush1.msra.mxu0 %v223
    %366 = vmatprep.subr.mxu0 %v228
    %367 = vmatpush1.msra.mxu0 %v227
    %368 = vmatprep.subr.mxu0 %v232
    %369 = vmatpush1.msra.mxu0 %v231
    %370 = vmatprep.subr.mxu0 %v236
    %371 = vmatpush1.msra.mxu0 %v235
    %372 = vmatprep.subr.mxu0 %v240
    %373 = vmatpush1.msra.mxu0 %v239
    %374 = vmatprep.subr.mxu0 %v244
    %375 = vmatpush1.msra.mxu0 %v243
    %376 = vmatprep.subr.mxu0 %v248
    %377 = vmatpush1.msra.mxu0 %v247
    %378 = vmatprep.subr.mxu0 %v252
    %379 = vmatpush1.msra.mxu0 %v251
    %380 = vmatprep.subr.mxu0 0.0
    %381 = vmatpush1.msra.mxu0 0.0
    %382 = vmatprep.subr.mxu0 0.0
    %383 = vmatpush1.msra.mxu0 0.0
    %384 = vmatprep.subr.mxu0 0.0
    %385 = vmatpush1.msra.mxu0 0.0
    %386 = vmatprep.subr.mxu0 0.0
    %387 = vmatpush1.msra.mxu0 0.0
    %388 = vmatprep.subr.mxu0 0.0
    %389 = vmatpush1.msra.mxu0 0.0
    %390 = vmatprep.subr.mxu0 0.0
    %391 = vmatpush1.msra.mxu0 0.0
    %392 = vmatprep.subr.mxu0 0.0
    %393 = vmatpush1.msra.mxu0 0.0
    %394 = vmatprep.subr.mxu0 0.0
    %395 = vmatpush1.msra.mxu0 0.0
    %396 = vmatprep.subr.mxu0 0.0
    %397 = vmatpush1.msra.mxu0 0.0
    %398 = vmatprep.subr.mxu0 0.0
    %399 = vmatpush1.msra.mxu0 0.0
    %400 = vmatprep.subr.mxu0 0.0
    %401 = vmatpush1.msra.mxu0 0.0
    %402 = vmatprep.subr.mxu0 0.0
    %403 = vmatpush1.msra.mxu0 0.0
    %404 = vmatprep.subr.mxu0 0.0
    %405 = vmatpush1.msra.mxu0 0.0
    %406 = vmatprep.subr.mxu0 0.0
    %407 = vmatpush1.msra.mxu0 0.0
    %408 = vmatprep.subr.mxu0 0.0
    %409 = vmatpush1.msra.mxu0 0.0
    %410 = vmatprep.subr.mxu0 0.0
    %411 = vmatpush1.msra.mxu0 0.0
    %412 = vmatprep.mubr.f32.mxu0 0.0
    %413 = vmatmul.mubr.f32.gmra.mrb[0].mxu0 %v62
    %v414 = vpop.f32.mrb[0].mxu0
    %v415 = vadd.f32 %v344, %v414
    %v416 = vpop.f32.mrb[0].mxu0
    %v417 = vadd.f32 %v346, %v416
    %418 = vdwg.mxu0
    %419 = vmatprep.subr.mxu0 %v66
    %420 = vmatpush1.msra.mxu0 %v65
    %421 = vmatprep.subr.mxu0 %v70
    %422 = vmatpush1.msra.mxu0 %v69
    %423 = vmatprep.subr.mxu0 %v74
    %424 = vmatpush1.msra.mxu0 %v73
    %425 = vmatprep.subr.mxu0 %v78
    %426 = vmatpush1.msra.mxu0 %v77
    %427 = vmatprep.subr.mxu0 %v82
    %428 = vmatpush1.msra.mxu0 %v81
    %429 = vmatprep.subr.mxu0 %v86
    %430 = vmatpush1.msra.mxu0 %v85
    %431 = vmatprep.subr.mxu0 %v90
    %432 = vmatpush1.msra.mxu0 %v89
    %433 = vmatprep.subr.mxu0 %v94
    %434 = vmatpush1.msra.mxu0 %v93
    %435 = vmatprep.subr.mxu0 %v98
    %436 = vmatpush1.msra.mxu0 %v97
    %437 = vmatprep.subr.mxu0 %v102
    %438 = vmatpush1.msra.mxu0 %v101
    %439 = vmatprep.subr.mxu0 %v106
    %440 = vmatpush1.msra.mxu0 %v105
    %441 = vmatprep.subr.mxu0 %v110
    %442 = vmatpush1.msra.mxu0 %v109
    %443 = vmatprep.subr.mxu0 %v114
    %444 = vmatpush1.msra.mxu0 %v113
    %445 = vmatprep.subr.mxu0 %v118
    %446 = vmatpush1.msra.mxu0 %v117
    %447 = vmatprep.subr.mxu0 %v122
    %448 = vmatpush1.msra.mxu0 %v121
    %449 = vmatprep.subr.mxu0 %v126
    %450 = vmatpush1.msra.mxu0 %v125
    %451 = vmatprep.subr.mxu0 %v130
    %452 = vmatpush1.msra.mxu0 %v129
    %453 = vmatprep.subr.mxu0 %v134
    %454 = vmatpush1.msra.mxu0 %v133
    %455 = vmatprep.subr.mxu0 %v138
    %456 = vmatpush1.msra.mxu0 %v137
    %457 = vmatprep.subr.mxu0 %v142
    %458 = vmatpush1.msra.mxu0 %v141
    %459 = vmatprep.subr.mxu0 %v146
    %460 = vmatpush1.msra.mxu0 %v145
    %461 = vmatprep.subr.mxu0 %v150
    %462 = vmatpush1.msra.mxu0 %v149
    %463 = vmatprep.subr.mxu0 %v154
    %464 = vmatpush1.msra.mxu0 %v153
    %465 = vmatprep.subr.mxu0 %v158
    %466 = vmatpush1.msra.mxu0 %v157
    %467 = vmatprep.subr.mxu0 %v162
    %468 = vmatpush1.msra.mxu0 %v161
    %469 = vmatprep.subr.mxu0 %v166
    %470 = vmatpush1.msra.mxu0 %v165
    %471 = vmatprep.subr.mxu0 %v170
    %472 = vmatpush1.msra.mxu0 %v169
    %473 = vmatprep.subr.mxu0 %v174
    %474 = vmatpush1.msra.mxu0 %v173
    %475 = vmatprep.subr.mxu0 %v178
    %476 = vmatpush1.msra.mxu0 %v177
    %477 = vmatprep.subr.mxu0 %v182
    %478 = vmatpush1.msra.mxu0 %v181
    %479 = vmatprep.subr.mxu0 %v186
    %480 = vmatpush1.msra.mxu0 %v185
    %481 = vmatprep.subr.mxu0 %v190
    %482 = vmatpush1.msra.mxu0 %v189
    %483 = vmatprep.mubr.f32.mxu0 %v61
    %484 = vmatmul.mubr.f32.gmra.mrb[0].mxu0 %v60
    %v485 = vpop.f32.mrb[0].mxu0
    %v486 = vadd.f32 %v268, %v485
    %v487 = vpop.f32.mrb[0].mxu0
    %v488 = vadd.f32 %v272, %v487
    %489 = vdwg.mxu0
    %490 = vmatprep.subr.mxu0 %v194
    %491 = vmatpush1.msra.mxu0 %v193
    %492 = vmatprep.subr.mxu0 %v198
    %493 = vmatpush1.msra.mxu0 %v197
    %494 = vmatprep.subr.mxu0 %v202
    %495 = vmatpush1.msra.mxu0 %v201
    %496 = vmatprep.subr.mxu0 %v206
    %497 = vmatpush1.msra.mxu0 %v205
    %498 = vmatprep.subr.mxu0 %v210
    %499 = vmatpush1.msra.mxu0 %v209
    %500 = vmatprep.subr.mxu0 %v214
    %501 = vmatpush1.msra.mxu0 %v213
    %502 = vmatprep.subr.mxu0 %v218
    %503 = vmatpush1.msra.mxu0 %v217
    %504 = vmatprep.subr.mxu0 %v222
    %505 = vmatpush1.msra.mxu0 %v221
    %506 = vmatprep.subr.mxu0 %v226
    %507 = vmatpush1.msra.mxu0 %v225
    %508 = vmatprep.subr.mxu0 %v230
    %509 = vmatpush1.msra.mxu0 %v229
    %510 = vmatprep.subr.mxu0 %v234
    %511 = vmatpush1.msra.mxu0 %v233
    %512 = vmatprep.subr.mxu0 %v238
    %513 = vmatpush1.msra.mxu0 %v237
    %514 = vmatprep.subr.mxu0 %v242
    %515 = vmatpush1.msra.mxu0 %v241
    %516 = vmatprep.subr.mxu0 %v246
    %517 = vmatpush1.msra.mxu0 %v245
    %518 = vmatprep.subr.mxu0 %v250
    %519 = vmatpush1.msra.mxu0 %v249
    %520 = vmatprep.subr.mxu0 %v254
    %521 = vmatpush1.msra.mxu0 %v253
    %522 = vmatprep.subr.mxu0 0.0
    %523 = vmatpush1.msra.mxu0 0.0
    %524 = vmatprep.subr.mxu0 0.0
    %525 = vmatpush1.msra.mxu0 0.0
    %526 = vmatprep.subr.mxu0 0.0
    %527 = vmatpush1.msra.mxu0 0.0
    %528 = vmatprep.subr.mxu0 0.0
    %529 = vmatpush1.msra.mxu0 0.0
    %530 = vmatprep.subr.mxu0 0.0
    %531 = vmatpush1.msra.mxu0 0.0
    %532 = vmatprep.subr.mxu0 0.0
    %533 = vmatpush1.msra.mxu0 0.0
    %534 = vmatprep.subr.mxu0 0.0
    %535 = vmatpush1.msra.mxu0 0.0
    %536 = vmatprep.subr.mxu0 0.0
    %537 = vmatpush1.msra.mxu0 0.0
    %538 = vmatprep.subr.mxu0 0.0
    %539 = vmatpush1.msra.mxu0 0.0
    %540 = vmatprep.subr.mxu0 0.0
    %541 = vmatpush1.msra.mxu0 0.0
    %542 = vmatprep.subr.mxu0 0.0
    %543 = vmatpush1.msra.mxu0 0.0
    %544 = vmatprep.subr.mxu0 0.0
    %545 = vmatpush1.msra.mxu0 0.0
    %546 = vmatprep.subr.mxu0 0.0
    %547 = vmatpush1.msra.mxu0 0.0
    %548 = vmatprep.subr.mxu0 0.0
    %549 = vmatpush1.msra.mxu0 0.0
    %550 = vmatprep.subr.mxu0 0.0
    %551 = vmatpush1.msra.mxu0 0.0
    %552 = vmatprep.subr.mxu0 0.0
    %553 = vmatpush1.msra.mxu0 0.0
    %554 = vmatprep.mubr.f32.mxu0 0.0
    %555 = vmatmul.mubr.f32.gmra.mrb[0].mxu0 %v62
    %v556 = vpop.f32.mrb[0].mxu0
    %v557 = vadd.f32 %v486, %v556
    %v558 = vpop.f32.mrb[0].mxu0
    %v559 = vadd.f32 %v488, %v558
    %560 = vdwg.mxu0
    %v561 = vld [vmem:[#allocation7] sm:$0xff]
    %v562 = vld [vmem:[#allocation7 + $0x8] sm:$0xff]
    %v563 = vld [vmem:[#allocation7 + $0x10] sm:$0xff]
    %v564 = vld [vmem:[#allocation7 + $0x18] sm:$0xff]
    %v565 = vld [vmem:[#allocation7 + $0x20] sm:$0xff]
    %v566 = vld [vmem:[#allocation7 + $0x28] sm:$0xff]
    %v567 = vld [vmem:[#allocation7 + $0x30] sm:$0xff]
    %v568 = vld [vmem:[#allocation7 + $0x38] sm:$0xff]
    %v569 = vld [vmem:[#allocation7 + $0x40] sm:$0xff]
    %v570 = vld [vmem:[#allocation7 + $0x48] sm:$0xff]
    %v571 = vld [vmem:[#allocation7 + $0x50] sm:$0xff]
    %v572 = vld [vmem:[#allocation7 + $0x58] sm:$0xff]
    %v573 = vld [vmem:[#allocation7 + $0x60] sm:$0xff]
    %v574 = vld [vmem:[#allocation7 + $0x68] sm:$0xff]
    %v575 = vld [vmem:[#allocation7 + $0x70] sm:$0xff]
    %v576 = vld [vmem:[#allocation7 + $0x78] sm:$0xff]
    %v577 = vld [vmem:[#allocation7 + $0x80] sm:$0xff]
    %v578 = vld [vmem:[#allocation7 + $0x88] sm:$0xff]
    %v579 = vld [vmem:[#allocation7 + $0x90] sm:$0xff]
    %v580 = vld [vmem:[#allocation7 + $0x98] sm:$0xff]
    %v581 = vld [vmem:[#allocation7 + $0xa0] sm:$0xff]
    %v582 = vld [vmem:[#allocation7 + $0xa8] sm:$0xff]
    %v583 = vld [vmem:[#allocation7 + $0xb0] sm:$0xff]
    %v584 = vld [vmem:[#allocation7 + $0xb8] sm:$0xff]
    %v585 = vld [vmem:[#allocation7 + $0xc0] sm:$0xff]
    %v586 = vld [vmem:[#allocation7 + $0xc8] sm:$0xff]
    %v587 = vld [vmem:[#allocation7 + $0xd0] sm:$0xff]
    %v588 = vld [vmem:[#allocation7 + $0xd8] sm:$0xff]
    %v589 = vld [vmem:[#allocation7 + $0xe0] sm:$0xff]
    %v590 = vld [vmem:[#allocation7 + $0xe8] sm:$0xff]
    %v591 = vld [vmem:[#allocation7 + $0xf0] sm:$0xff]
    %v592 = vld [vmem:[#allocation7 + $0xf8] sm:$0xff]
    %v593 = vld [vmem:[#allocation7 + $0x100] sm:$0xff]
    %v594 = vld [vmem:[#allocation7 + $0x108] sm:$0xff]
    %v595 = vld [vmem:[#allocation7 + $0x110] sm:$0xff]
    %v596 = vld [vmem:[#allocation7 + $0x118] sm:$0xff]
    %v597 = vld [vmem:[#allocation7 + $0x120] sm:$0xff]
    %v598 = vld [vmem:[#allocation7 + $0x128] sm:$0xff]
    %v599 = vld [vmem:[#allocation7 + $0x130] sm:$0xff]
    %v600 = vld [vmem:[#allocation7 + $0x138] sm:$0xff]
    %v601 = vld [vmem:[#allocation7 + $0x140] sm:$0xff]
    %v602 = vld [vmem:[#allocation7 + $0x148] sm:$0xff]
    %v603 = vld [vmem:[#allocation7 + $0x150] sm:$0xff]
    %v604 = vld [vmem:[#allocation7 + $0x158] sm:$0xff]
    %v605 = vld [vmem:[#allocation7 + $0x160] sm:$0xff]
    %v606 = vld [vmem:[#allocation7 + $0x168] sm:$0xff]
    %v607 = vld [vmem:[#allocation7 + $0x170] sm:$0xff]
    %v608 = vld [vmem:[#allocation7 + $0x178] sm:$0xff]
    %v609 = vld [vmem:[#allocation7 + $0x180] sm:$0xff]
    %v610 = vld [vmem:[#allocation7 + $0x188] sm:$0xff]
    %v611 = vld [vmem:[#allocation7 + $0x190] sm:$0xff]
    %v612 = vld [vmem:[#allocation7 + $0x198] sm:$0xff]
    %v613 = vld [vmem:[#allocation7 + $0x1a0] sm:$0xff]
    %v614 = vld [vmem:[#allocation7 + $0x1a8] sm:$0xff]
    %v615 = vld [vmem:[#allocation7 + $0x1b0] sm:$0xff]
    %v616 = vld [vmem:[#allocation7 + $0x1b8] sm:$0xff]
    %v617 = vld [vmem:[#allocation7 + $0x1c0] sm:$0xff]
    %v618 = vld [vmem:[#allocation7 + $0x1c8] sm:$0xff]
    %v619 = vld [vmem:[#allocation7 + $0x1d0] sm:$0xff]
    %v620 = vld [vmem:[#allocation7 + $0x1d8] sm:$0xff]
    %v621 = vld [vmem:[#allocation7 + $0x1e0] sm:$0xff]
    %v622 = vld [vmem:[#allocation7 + $0x1e8] sm:$0xff]
    %v623 = vld [vmem:[#allocation7 + $0x1f0] sm:$0xff]
    %v624 = vld [vmem:[#allocation7 + $0x1f8] sm:$0xff]
    %v625 = vld [vmem:[#allocation7 + $0x200] sm:$0xff]
    %v626 = vld [vmem:[#allocation7 + $0x208] sm:$0xff]
    %v627 = vld [vmem:[#allocation7 + $0x210] sm:$0xff]
    %v628 = vld [vmem:[#allocation7 + $0x218] sm:$0xff]
    %v629 = vld [vmem:[#allocation7 + $0x220] sm:$0xff]
    %v630 = vld [vmem:[#allocation7 + $0x228] sm:$0xff]
    %v631 = vld [vmem:[#allocation7 + $0x230] sm:$0xff]
    %v632 = vld [vmem:[#allocation7 + $0x238] sm:$0xff]
    %v633 = vld [vmem:[#allocation7 + $0x240] sm:$0xff]
    %v634 = vld [vmem:[#allocation7 + $0x248] sm:$0xff]
    %v635 = vld [vmem:[#allocation7 + $0x250] sm:$0xff]
    %v636 = vld [vmem:[#allocation7 + $0x258] sm:$0xff]
    %v637 = vld [vmem:[#allocation7 + $0x260] sm:$0xff]
    %v638 = vld [vmem:[#allocation7 + $0x268] sm:$0xff]
    %v639 = vld [vmem:[#allocation7 + $0x270] sm:$0xff]
    %v640 = vld [vmem:[#allocation7 + $0x278] sm:$0xff]
    %v641 = vld [vmem:[#allocation7 + $0x280] sm:$0xff]
    %v642 = vld [vmem:[#allocation7 + $0x288] sm:$0xff]
    %v643 = vld [vmem:[#allocation7 + $0x290] sm:$0xff]
    %v644 = vld [vmem:[#allocation7 + $0x298] sm:$0xff]
    %v645 = vld [vmem:[#allocation7 + $0x2a0] sm:$0xff]
    %v646 = vld [vmem:[#allocation7 + $0x2a8] sm:$0xff]
    %v647 = vld [vmem:[#allocation7 + $0x2b0] sm:$0xff]
    %v648 = vld [vmem:[#allocation7 + $0x2b8] sm:$0xff]
    %v649 = vld [vmem:[#allocation7 + $0x2c0] sm:$0xff]
    %v650 = vld [vmem:[#allocation7 + $0x2c8] sm:$0xff]
    %v651 = vld [vmem:[#allocation7 + $0x2d0] sm:$0xff]
    %v652 = vld [vmem:[#allocation7 + $0x2d8] sm:$0xff]
    %v653 = vld [vmem:[#allocation7 + $0x2e0] sm:$0xff]
    %v654 = vld [vmem:[#allocation7 + $0x2e8] sm:$0xff]
    %v655 = vld [vmem:[#allocation7 + $0x2f0] sm:$0xff]
    %v656 = vld [vmem:[#allocation7 + $0x2f8] sm:$0xff]
    %v657 = vld [vmem:[#allocation7 + $0x300] sm:$0xff]
    %v658 = vld [vmem:[#allocation7 + $0x308] sm:$0xff]
    %v659 = vld [vmem:[#allocation7 + $0x310] sm:$0xff]
    %v660 = vld [vmem:[#allocation7 + $0x318] sm:$0xff]
    %v661 = vld [vmem:[#allocation7 + $0x320] sm:$0xff]
    %v662 = vld [vmem:[#allocation7 + $0x328] sm:$0xff]
    %v663 = vld [vmem:[#allocation7 + $0x330] sm:$0xff]
    %v664 = vld [vmem:[#allocation7 + $0x338] sm:$0xff]
    %v665 = vld [vmem:[#allocation7 + $0x340] sm:$0xff]
    %v666 = vld [vmem:[#allocation7 + $0x348] sm:$0xff]
    %v667 = vld [vmem:[#allocation7 + $0x350] sm:$0xff]
    %v668 = vld [vmem:[#allocation7 + $0x358] sm:$0xff]
    %v669 = vld [vmem:[#allocation7 + $0x360] sm:$0xff]
    %v670 = vld [vmem:[#allocation7 + $0x368] sm:$0xff]
    %v671 = vld [vmem:[#allocation7 + $0x370] sm:$0xff]
    %v672 = vld [vmem:[#allocation7 + $0x378] sm:$0xff]
    %v673 = vld [vmem:[#allocation7 + $0x380] sm:$0xff]
    %v674 = vld [vmem:[#allocation7 + $0x388] sm:$0xff]
    %v675 = vld [vmem:[#allocation7 + $0x390] sm:$0xff]
    %v676 = vld [vmem:[#allocation7 + $0x398] sm:$0xff]
    %v677 = vld [vmem:[#allocation7 + $0x3a0] sm:$0xff]
    %v678 = vld [vmem:[#allocation7 + $0x3a8] sm:$0xff]
    %v679 = vld [vmem:[#allocation7 + $0x3b0] sm:$0xff]
    %v680 = vld [vmem:[#allocation7 + $0x3b8] sm:$0xff]
    %v681 = vld [vmem:[#allocation7 + $0x3c0] sm:$0xff]
    %v682 = vld [vmem:[#allocation7 + $0x3c8] sm:$0xff]
    %v683 = vld [vmem:[#allocation7 + $0x3d0] sm:$0xff]
    %v684 = vld [vmem:[#allocation7 + $0x3d8] sm:$0xff]
    %v685 = vld [vmem:[#allocation7 + $0x3e0] sm:$0xff]
    %v686 = vld [vmem:[#allocation7 + $0x3e8] sm:$0xff]
    %v687 = vld [vmem:[#allocation7 + $0x3f0] sm:$0xff]
    %v688 = vld [vmem:[#allocation7 + $0x3f8] sm:$0xff]
    %v689 = vld [vmem:[#allocation7 + $0x400] sm:$0xff]
    %v690 = vld [vmem:[#allocation7 + $0x408] sm:$0xff]
    %v691 = vld [vmem:[#allocation7 + $0x410] sm:$0xff]
    %v692 = vld [vmem:[#allocation7 + $0x418] sm:$0xff]
    %v693 = vld [vmem:[#allocation7 + $0x420] sm:$0xff]
    %v694 = vld [vmem:[#allocation7 + $0x428] sm:$0xff]
    %v695 = vld [vmem:[#allocation7 + $0x430] sm:$0xff]
    %v696 = vld [vmem:[#allocation7 + $0x438] sm:$0xff]
    %v697 = vld [vmem:[#allocation7 + $0x440] sm:$0xff]
    %v698 = vld [vmem:[#allocation7 + $0x448] sm:$0xff]
    %v699 = vld [vmem:[#allocation7 + $0x450] sm:$0xff]
    %v700 = vld [vmem:[#allocation7 + $0x458] sm:$0xff]
    %v701 = vld [vmem:[#allocation7 + $0x460] sm:$0xff]
    %v702 = vld [vmem:[#allocation7 + $0x468] sm:$0xff]
    %v703 = vld [vmem:[#allocation7 + $0x470] sm:$0xff]
    %v704 = vld [vmem:[#allocation7 + $0x478] sm:$0xff]
    %v705 = vld [vmem:[#allocation7 + $0x480] sm:$0xff]
    %v706 = vld [vmem:[#allocation7 + $0x488] sm:$0xff]
    %v707 = vld [vmem:[#allocation7 + $0x490] sm:$0xff]
    %v708 = vld [vmem:[#allocation7 + $0x498] sm:$0xff]
    %v709 = vld [vmem:[#allocation7 + $0x4a0] sm:$0xff]
    %v710 = vld [vmem:[#allocation7 + $0x4a8] sm:$0xff]
    %v711 = vld [vmem:[#allocation7 + $0x4b0] sm:$0xff]
    %v712 = vld [vmem:[#allocation7 + $0x4b8] sm:$0xff]
    %v713 = vld [vmem:[#allocation7 + $0x4c0] sm:$0xff]
    %v714 = vld [vmem:[#allocation7 + $0x4c8] sm:$0xff]
    %v715 = vld [vmem:[#allocation7 + $0x4d0] sm:$0xff]
    %v716 = vld [vmem:[#allocation7 + $0x4d8] sm:$0xff]
    %v717 = vld [vmem:[#allocation7 + $0x4e0] sm:$0xff]
    %v718 = vld [vmem:[#allocation7 + $0x4e8] sm:$0xff]
    %v719 = vld [vmem:[#allocation7 + $0x4f0] sm:$0xff]
    %v720 = vld [vmem:[#allocation7 + $0x4f8] sm:$0xff]
    %v721 = vld [vmem:[#allocation7 + $0x500] sm:$0xff]
    %v722 = vld [vmem:[#allocation7 + $0x508] sm:$0xff]
    %v723 = vld [vmem:[#allocation7 + $0x510] sm:$0xff]
    %v724 = vld [vmem:[#allocation7 + $0x518] sm:$0xff]
    %v725 = vld [vmem:[#allocation7 + $0x520] sm:$0xff]
    %v726 = vld [vmem:[#allocation7 + $0x528] sm:$0xff]
    %v727 = vld [vmem:[#allocation7 + $0x530] sm:$0xff]
    %v728 = vld [vmem:[#allocation7 + $0x538] sm:$0xff]
    %v729 = vld [vmem:[#allocation7 + $0x540] sm:$0xff]
    %v730 = vld [vmem:[#allocation7 + $0x548] sm:$0xff]
    %v731 = vld [vmem:[#allocation7 + $0x550] sm:$0xff]
    %v732 = vld [vmem:[#allocation7 + $0x558] sm:$0xff]
    %v733 = vld [vmem:[#allocation7 + $0x560] sm:$0xff]
    %v734 = vld [vmem:[#allocation7 + $0x568] sm:$0xff]
    %v735 = vld [vmem:[#allocation7 + $0x570] sm:$0xff]
    %v736 = vld [vmem:[#allocation7 + $0x578] sm:$0xff]
    %v737 = vld [vmem:[#allocation7 + $0x580] sm:$0xff]
    %v738 = vld [vmem:[#allocation7 + $0x588] sm:$0xff]
    %v739 = vld [vmem:[#allocation7 + $0x590] sm:$0xff]
    %v740 = vld [vmem:[#allocation7 + $0x598] sm:$0xff]
    %v741 = vld [vmem:[#allocation7 + $0x5a0] sm:$0xff]
    %v742 = vld [vmem:[#allocation7 + $0x5a8] sm:$0xff]
    %v743 = vld [vmem:[#allocation7 + $0x5b0] sm:$0xff]
    %v744 = vld [vmem:[#allocation7 + $0x5b8] sm:$0xff]
    %v745 = vld [vmem:[#allocation7 + $0x5c0] sm:$0xff]
    %v746 = vld [vmem:[#allocation7 + $0x5c8] sm:$0xff]
    %v747 = vld [vmem:[#allocation7 + $0x5d0] sm:$0xff]
    %v748 = vld [vmem:[#allocation7 + $0x5d8] sm:$0xff]
    %v749 = vld [vmem:[#allocation7 + $0x5e0] sm:$0xff]
    %v750 = vld [vmem:[#allocation7 + $0x5e8] sm:$0xff]
    %v751 = vld [vmem:[#allocation7 + $0x5f0] sm:$0xff]
    %v752 = vld [vmem:[#allocation7 + $0x5f8] sm:$0xff]
    %v753 = vld [vmem:[#allocation7 + $0x600] sm:$0xff]
    %v754 = vld [vmem:[#allocation7 + $0x608] sm:$0xff]
    %v755 = vld [vmem:[#allocation7 + $0x610] sm:$0xff]
    %v756 = vld [vmem:[#allocation7 + $0x618] sm:$0xff]
    %v757 = vld [vmem:[#allocation7 + $0x620] sm:$0xff]
    %v758 = vld [vmem:[#allocation7 + $0x628] sm:$0xff]
    %v759 = vld [vmem:[#allocation7 + $0x630] sm:$0xff]
    %v760 = vld [vmem:[#allocation7 + $0x638] sm:$0xff]
    %v761 = vld [vmem:[#allocation7 + $0x640] sm:$0xff]
    %v762 = vld [vmem:[#allocation7 + $0x648] sm:$0xff]
    %v763 = vld [vmem:[#allocation7 + $0x650] sm:$0xff]
    %v764 = vld [vmem:[#allocation7 + $0x658] sm:$0xff]
    %v765 = vld [vmem:[#allocation7 + $0x660] sm:$0xff]
    %v766 = vld [vmem:[#allocation7 + $0x668] sm:$0xff]
    %v767 = vld [vmem:[#allocation7 + $0x670] sm:$0xff]
    %v768 = vld [vmem:[#allocation7 + $0x678] sm:$0xff]
    %v769 = vld [vmem:[#allocation7 + $0x680] sm:$0xff]
    %v770 = vld [vmem:[#allocation7 + $0x688] sm:$0xff]
    %v771 = vld [vmem:[#allocation7 + $0x690] sm:$0xff]
    %v772 = vld [vmem:[#allocation7 + $0x698] sm:$0xff]
    %v773 = vld [vmem:[#allocation7 + $0x6a0] sm:$0xff]
    %v774 = vld [vmem:[#allocation7 + $0x6a8] sm:$0xff]
    %v775 = vld [vmem:[#allocation7 + $0x6b0] sm:$0xff]
    %v776 = vld [vmem:[#allocation7 + $0x6b8] sm:$0xff]
    %v777 = vld [vmem:[#allocation7 + $0x6c0] sm:$0xff]
    %v778 = vld [vmem:[#allocation7 + $0x6c8] sm:$0xff]
    %v779 = vld [vmem:[#allocation7 + $0x6d0] sm:$0xff]
    %v780 = vld [vmem:[#allocation7 + $0x6d8] sm:$0xff]
    %v781 = vld [vmem:[#allocation7 + $0x6e0] sm:$0xff]
    %v782 = vld [vmem:[#allocation7 + $0x6e8] sm:$0xff]
    %v783 = vld [vmem:[#allocation7 + $0x6f0] sm:$0xff]
    %v784 = vld [vmem:[#allocation7 + $0x6f8] sm:$0xff]
    %v785 = vld [vmem:[#allocation7 + $0x700] sm:$0xff]
    %v786 = vld [vmem:[#allocation7 + $0x708] sm:$0xff]
    %v787 = vld [vmem:[#allocation7 + $0x710] sm:$0xff]
    %v788 = vld [vmem:[#allocation7 + $0x718] sm:$0xff]
    %v789 = vld [vmem:[#allocation7 + $0x720] sm:$0xff]
    %v790 = vld [vmem:[#allocation7 + $0x728] sm:$0xff]
    %v791 = vld [vmem:[#allocation7 + $0x730] sm:$0xff]
    %v792 = vld [vmem:[#allocation7 + $0x738] sm:$0xff]
    %v793 = vld [vmem:[#allocation7 + $0x740] sm:$0xff]
    %v794 = vld [vmem:[#allocation7 + $0x748] sm:$0xff]
    %v795 = vld [vmem:[#allocation7 + $0x750] sm:$0xff]
    %v796 = vld [vmem:[#allocation7 + $0x758] sm:$0xff]
    %v797 = vld [vmem:[#allocation7 + $0x760] sm:$0xff]
    %v798 = vld [vmem:[#allocation7 + $0x768] sm:$0xff]
    %v799 = vld [vmem:[#allocation7 + $0x770] sm:$0xff]
    %v800 = vld [vmem:[#allocation7 + $0x778] sm:$0xff]
    %v801 = vld [vmem:[#allocation7 + $0x780] sm:$0xff]
    %v802 = vld [vmem:[#allocation7 + $0x788] sm:$0xff]
    %v803 = vld [vmem:[#allocation7 + $0x790] sm:$0xff]
    %v804 = vld [vmem:[#allocation7 + $0x798] sm:$0xff]
    %v805 = vld [vmem:[#allocation7 + $0x7a0] sm:$0xff]
    %v806 = vld [vmem:[#allocation7 + $0x7a8] sm:$0xff]
    %v807 = vld [vmem:[#allocation7 + $0x7b0] sm:$0xff]
    %v808 = vld [vmem:[#allocation7 + $0x7b8] sm:$0xff]
    %v809 = vld [vmem:[#allocation7 + $0x7c0] sm:$0xff]
    %v810 = vld [vmem:[#allocation7 + $0x7c8] sm:$0xff]
    %v811 = vld [vmem:[#allocation7 + $0x7d0] sm:$0xff]
    %v812 = vld [vmem:[#allocation7 + $0x7d8] sm:$0xff]
    %v813 = vld [vmem:[#allocation7 + $0x7e0] sm:$0xff]
    %v814 = vld [vmem:[#allocation7 + $0x7e8] sm:$0xff]
    %v815 = vld [vmem:[#allocation7 + $0x7f0] sm:$0xff]
    %v816 = vld [vmem:[#allocation7 + $0x7f8] sm:$0xff]
    %v817 = vld [vmem:[%s4] sm:$0xf]
    %v819 = vlaneseq
    %v820 = vshrl.u32 %v819, 7
    %v821 = vsub.s32 0, %v820
    %v822 = vrot.slane %v817, %v821
    %v823 = vlaneseq
    %v824 = vshrl.u32 %v823, 7
    %v825 = vsub.s32 1, %v824
    %v826 = vrot.slane %v817, %v825
    %v827 = vlaneseq
    %v828 = vshrl.u32 %v827, 7
    %v829 = vsub.s32 2, %v828
    %v830 = vrot.slane %v817, %v829
    %v831 = vlaneseq
    %v832 = vshrl.u32 %v831, 7
    %v833 = vsub.s32 3, %v832
    %v834 = vrot.slane %v817, %v833
    %839 = vmatprep.subr.mxu0 %v562
    %840 = vmatpush1.msra.mxu0 %v561
    %841 = vmatprep.subr.mxu0 %v566
    %842 = vmatpush1.msra.mxu0 %v565
    %843 = vmatprep.subr.mxu0 %v570
    %844 = vmatpush1.msra.mxu0 %v569
    %845 = vmatprep.subr.mxu0 %v574
    %846 = vmatpush1.msra.mxu0 %v573
    %847 = vmatprep.subr.mxu0 %v578
    %848 = vmatpush1.msra.mxu0 %v577
    %849 = vmatprep.subr.mxu0 %v582
    %850 = vmatpush1.msra.mxu0 %v581
    %851 = vmatprep.subr.mxu0 %v586
    %852 = vmatpush1.msra.mxu0 %v585
    %853 = vmatprep.subr.mxu0 %v590
    %854 = vmatpush1.msra.mxu0 %v589
    %855 = vmatprep.subr.mxu0 %v594
    %856 = vmatpush1.msra.mxu0 %v593
    %857 = vmatprep.subr.mxu0 %v598
    %858 = vmatpush1.msra.mxu0 %v597
    %859 = vmatprep.subr.mxu0 %v602
    %860 = vmatpush1.msra.mxu0 %v601
    %861 = vmatprep.subr.mxu0 %v606
    %862 = vmatpush1.msra.mxu0 %v605
    %863 = vmatprep.subr.mxu0 %v610
    %864 = vmatpush1.msra.mxu0 %v609
    %865 = vmatprep.subr.mxu0 %v614
    %866 = vmatpush1.msra.mxu0 %v613
    %867 = vmatprep.subr.mxu0 %v618
    %868 = vmatpush1.msra.mxu0 %v617
    %869 = vmatprep.subr.mxu0 %v622
    %870 = vmatpush1.msra.mxu0 %v621
    %871 = vmatprep.subr.mxu0 %v626
    %872 = vmatpush1.msra.mxu0 %v625
    %873 = vmatprep.subr.mxu0 %v630
    %874 = vmatpush1.msra.mxu0 %v629
    %875 = vmatprep.subr.mxu0 %v634
    %876 = vmatpush1.msra.mxu0 %v633
    %877 = vmatprep.subr.mxu0 %v638
    %878 = vmatpush1.msra.mxu0 %v637
    %879 = vmatprep.subr.mxu0 %v642
    %880 = vmatpush1.msra.mxu0 %v641
    %881 = vmatprep.subr.mxu0 %v646
    %882 = vmatpush1.msra.mxu0 %v645
    %883 = vmatprep.subr.mxu0 %v650
    %884 = vmatpush1.msra.mxu0 %v649
    %885 = vmatprep.subr.mxu0 %v654
    %886 = vmatpush1.msra.mxu0 %v653
    %887 = vmatprep.subr.mxu0 %v658
    %888 = vmatpush1.msra.mxu0 %v657
    %889 = vmatprep.subr.mxu0 %v662
    %890 = vmatpush1.msra.mxu0 %v661
    %891 = vmatprep.subr.mxu0 %v666
    %892 = vmatpush1.msra.mxu0 %v665
    %893 = vmatprep.subr.mxu0 %v670
    %894 = vmatpush1.msra.mxu0 %v669
    %895 = vmatprep.subr.mxu0 %v674
    %896 = vmatpush1.msra.mxu0 %v673
    %897 = vmatprep.subr.mxu0 %v678
    %898 = vmatpush1.msra.mxu0 %v677
    %899 = vmatprep.subr.mxu0 %v682
    %900 = vmatpush1.msra.mxu0 %v681
    %901 = vmatprep.subr.mxu0 %v686
    %902 = vmatpush1.msra.mxu0 %v685
    %903 = vmatprep.mubr.f32.mxu0 %v417
    %904 = vmatmul.mubr.f32.gmra.mrb[0].mxu0 %v415
    %v905 = vpop.f32.mrb[0].mxu0
    %v906 = vadd.f32 %v822, %v905
    %v907 = vpop.f32.mrb[0].mxu0
    %v908 = vadd.f32 %v826, %v907
    %909 = vdwg.mxu0
    %910 = vmatprep.subr.mxu0 %v690
    %911 = vmatpush1.msra.mxu0 %v689
    %912 = vmatprep.subr.mxu0 %v694
    %913 = vmatpush1.msra.mxu0 %v693
    %914 = vmatprep.subr.mxu0 %v698
    %915 = vmatpush1.msra.mxu0 %v697
    %916 = vmatprep.subr.mxu0 %v702
    %917 = vmatpush1.msra.mxu0 %v701
    %918 = vmatprep.subr.mxu0 %v706
    %919 = vmatpush1.msra.mxu0 %v705
    %920 = vmatprep.subr.mxu0 %v710
    %921 = vmatpush1.msra.mxu0 %v709
    %922 = vmatprep.subr.mxu0 %v714
    %923 = vmatpush1.msra.mxu0 %v713
    %924 = vmatprep.subr.mxu0 %v718
    %925 = vmatpush1.msra.mxu0 %v717
    %926 = vmatprep.subr.mxu0 %v722
    %927 = vmatpush1.msra.mxu0 %v721
    %928 = vmatprep.subr.mxu0 %v726
    %929 = vmatpush1.msra.mxu0 %v725
    %930 = vmatprep.subr.mxu0 %v730
    %931 = vmatpush1.msra.mxu0 %v729
    %932 = vmatprep.subr.mxu0 %v734
    %933 = vmatpush1.msra.mxu0 %v733
    %934 = vmatprep.subr.mxu0 %v738
    %935 = vmatpush1.msra.mxu0 %v737
    %936 = vmatprep.subr.mxu0 %v742
    %937 = vmatpush1.msra.mxu0 %v741
    %938 = vmatprep.subr.mxu0 %v746
    %939 = vmatpush1.msra.mxu0 %v745
    %940 = vmatprep.subr.mxu0 %v750
    %941 = vmatpush1.msra.mxu0 %v749
    %942 = vmatprep.subr.mxu0 %v754
    %943 = vmatpush1.msra.mxu0 %v753
    %944 = vmatprep.subr.mxu0 %v758
    %945 = vmatpush1.msra.mxu0 %v757
    %946 = vmatprep.subr.mxu0 %v762
    %947 = vmatpush1.msra.mxu0 %v761
    %948 = vmatprep.subr.mxu0 %v766
    %949 = vmatpush1.msra.mxu0 %v765
    %950 = vmatprep.subr.mxu0 %v770
    %951 = vmatpush1.msra.mxu0 %v769
    %952 = vmatprep.subr.mxu0 %v774
    %953 = vmatpush1.msra.mxu0 %v773
    %954 = vmatprep.subr.mxu0 %v778
    %955 = vmatpush1.msra.mxu0 %v777
    %956 = vmatprep.subr.mxu0 %v782
    %957 = vmatpush1.msra.mxu0 %v781
    %958 = vmatprep.subr.mxu0 %v786
    %959 = vmatpush1.msra.mxu0 %v785
    %960 = vmatprep.subr.mxu0 %v790
    %961 = vmatpush1.msra.mxu0 %v789
    %962 = vmatprep.subr.mxu0 %v794
    %963 = vmatpush1.msra.mxu0 %v793
    %964 = vmatprep.subr.mxu0 %v798
    %965 = vmatpush1.msra.mxu0 %v797
    %966 = vmatprep.subr.mxu0 %v802
    %967 = vmatpush1.msra.mxu0 %v801
    %968 = vmatprep.subr.mxu0 %v806
    %969 = vmatpush1.msra.mxu0 %v805
    %970 = vmatprep.subr.mxu0 %v810
    %971 = vmatpush1.msra.mxu0 %v809
    %972 = vmatprep.subr.mxu0 %v814
    %973 = vmatpush1.msra.mxu0 %v813
    %974 = vmatprep.mubr.f32.mxu0 %v559
    %975 = vmatmul.mubr.f32.gmra.mrb[0].mxu0 %v557
    %v976 = vpop.f32.mrb[0].mxu0
    %v977 = vadd.f32 %v906, %v976
    %v978 = vpop.f32.mrb[0].mxu0
    %v979 = vadd.f32 %v908, %v978
    %980 = vdwg.mxu0
    %981 = vmatprep.subr.mxu0 %v564
    %982 = vmatpush1.msra.mxu0 %v563
    %983 = vmatprep.subr.mxu0 %v568
    %984 = vmatpush1.msra.mxu0 %v567
    %985 = vmatprep.subr.mxu0 %v572
    %986 = vmatpush1.msra.mxu0 %v571
    %987 = vmatprep.subr.mxu0 %v576
    %988 = vmatpush1.msra.mxu0 %v575
    %989 = vmatprep.subr.mxu0 %v580
    %990 = vmatpush1.msra.mxu0 %v579
    %991 = vmatprep.subr.mxu0 %v584
    %992 = vmatpush1.msra.mxu0 %v583
    %993 = vmatprep.subr.mxu0 %v588
    %994 = vmatpush1.msra.mxu0 %v587
    %995 = vmatprep.subr.mxu0 %v592
    %996 = vmatpush1.msra.mxu0 %v591
    %997 = vmatprep.subr.mxu0 %v596
    %998 = vmatpush1.msra.mxu0 %v595
    %999 = vmatprep.subr.mxu0 %v600
    %1000 = vmatpush1.msra.mxu0 %v599
    %1001 = vmatprep.subr.mxu0 %v604
    %1002 = vmatpush1.msra.mxu0 %v603
    %1003 = vmatprep.subr.mxu0 %v608
    %1004 = vmatpush1.msra.mxu0 %v607
    %1005 = vmatprep.subr.mxu0 %v612
    %1006 = vmatpush1.msra.mxu0 %v611
    %1007 = vmatprep.subr.mxu0 %v616
    %1008 = vmatpush1.msra.mxu0 %v615
    %1009 = vmatprep.subr.mxu0 %v620
    %1010 = vmatpush1.msra.mxu0 %v619
    %1011 = vmatprep.subr.mxu0 %v624
    %1012 = vmatpush1.msra.mxu0 %v623
    %1013 = vmatprep.subr.mxu0 %v628
    %1014 = vmatpush1.msra.mxu0 %v627
    %1015 = vmatprep.subr.mxu0 %v632
    %1016 = vmatpush1.msra.mxu0 %v631
    %1017 = vmatprep.subr.mxu0 %v636
    %1018 = vmatpush1.msra.mxu0 %v635
    %1019 = vmatprep.subr.mxu0 %v640
    %1020 = vmatpush1.msra.mxu0 %v639
    %1021 = vmatprep.subr.mxu0 %v644
    %1022 = vmatpush1.msra.mxu0 %v643
    %1023 = vmatprep.subr.mxu0 %v648
    %1024 = vmatpush1.msra.mxu0 %v647
    %1025 = vmatprep.subr.mxu0 %v652
    %1026 = vmatpush1.msra.mxu0 %v651
    %1027 = vmatprep.subr.mxu0 %v656
    %1028 = vmatpush1.msra.mxu0 %v655
    %1029 = vmatprep.subr.mxu0 %v660
    %1030 = vmatpush1.msra.mxu0 %v659
    %1031 = vmatprep.subr.mxu0 %v664
    %1032 = vmatpush1.msra.mxu0 %v663
    %1033 = vmatprep.subr.mxu0 %v668
    %1034 = vmatpush1.msra.mxu0 %v667
    %1035 = vmatprep.subr.mxu0 %v672
    %1036 = vmatpush1.msra.mxu0 %v671
    %1037 = vmatprep.subr.mxu0 %v676
    %1038 = vmatpush1.msra.mxu0 %v675
    %1039 = vmatprep.subr.mxu0 %v680
    %1040 = vmatpush1.msra.mxu0 %v679
    %1041 = vmatprep.subr.mxu0 %v684
    %1042 = vmatpush1.msra.mxu0 %v683
    %1043 = vmatprep.subr.mxu0 %v688
    %1044 = vmatpush1.msra.mxu0 %v687
    %1045 = vmatprep.mubr.f32.mxu0 %v417
    %1046 = vmatmul.mubr.f32.gmra.mrb[0].mxu0 %v415
    %v1047 = vpop.f32.mrb[0].mxu0
    %v1048 = vadd.f32 %v830, %v1047
    %v1049 = vpop.f32.mrb[0].mxu0
    %v1050 = vadd.f32 %v834, %v1049
    %1051 = vdwg.mxu0
    %1052 = vmatprep.subr.mxu0 %v692
    %1053 = vmatpush1.msra.mxu0 %v691
    %1054 = vmatprep.subr.mxu0 %v696
    %1055 = vmatpush1.msra.mxu0 %v695
    %1056 = vmatprep.subr.mxu0 %v700
    %1057 = vmatpush1.msra.mxu0 %v699
    %1058 = vmatprep.subr.mxu0 %v704
    %1059 = vmatpush1.msra.mxu0 %v703
    %1060 = vmatprep.subr.mxu0 %v708
    %1061 = vmatpush1.msra.mxu0 %v707
    %1062 = vmatprep.subr.mxu0 %v712
    %1063 = vmatpush1.msra.mxu0 %v711
    %1064 = vmatprep.subr.mxu0 %v716
    %1065 = vmatpush1.msra.mxu0 %v715
    %1066 = vmatprep.subr.mxu0 %v720
    %1067 = vmatpush1.msra.mxu0 %v719
    %1068 = vmatprep.subr.mxu0 %v724
    %1069 = vmatpush1.msra.mxu0 %v723
    %1070 = vmatprep.subr.mxu0 %v728
    %1071 = vmatpush1.msra.mxu0 %v727
    %1072 = vmatprep.subr.mxu0 %v732
    %1073 = vmatpush1.msra.mxu0 %v731
    %1074 = vmatprep.subr.mxu0 %v736
    %1075 = vmatpush1.msra.mxu0 %v735
    %1076 = vmatprep.subr.mxu0 %v740
    %1077 = vmatpush1.msra.mxu0 %v739
    %1078 = vmatprep.subr.mxu0 %v744
    %1079 = vmatpush1.msra.mxu0 %v743
    %1080 = vmatprep.subr.mxu0 %v748
    %1081 = vmatpush1.msra.mxu0 %v747
    %1082 = vmatprep.subr.mxu0 %v752
    %1083 = vmatpush1.msra.mxu0 %v751
    %1084 = vmatprep.subr.mxu0 %v756
    %1085 = vmatpush1.msra.mxu0 %v755
    %1086 = vmatprep.subr.mxu0 %v760
    %1087 = vmatpush1.msra.mxu0 %v759
    %1088 = vmatprep.subr.mxu0 %v764
    %1089 = vmatpush1.msra.mxu0 %v763
    %1090 = vmatprep.subr.mxu0 %v768
    %1091 = vmatpush1.msra.mxu0 %v767
    %1092 = vmatprep.subr.mxu0 %v772
    %1093 = vmatpush1.msra.mxu0 %v771
    %1094 = vmatprep.subr.mxu0 %v776
    %1095 = vmatpush1.msra.mxu0 %v775
    %1096 = vmatprep.subr.mxu0 %v780
    %1097 = vmatpush1.msra.mxu0 %v779
    %1098 = vmatprep.subr.mxu0 %v784
    %1099 = vmatpush1.msra.mxu0 %v783
    %1100 = vmatprep.subr.mxu0 %v788
    %1101 = vmatpush1.msra.mxu0 %v787
    %1102 = vmatprep.subr.mxu0 %v792
    %1103 = vmatpush1.msra.mxu0 %v791
    %1104 = vmatprep.subr.mxu0 %v796
    %1105 = vmatpush1.msra.mxu0 %v795
    %1106 = vmatprep.subr.mxu0 %v800
    %1107 = vmatpush1.msra.mxu0 %v799
    %1108 = vmatprep.subr.mxu0 %v804
    %1109 = vmatpush1.msra.mxu0 %v803
    %1110 = vmatprep.subr.mxu0 %v808
    %1111 = vmatpush1.msra.mxu0 %v807
    %1112 = vmatprep.subr.mxu0 %v812
    %1113 = vmatpush1.msra.mxu0 %v811
    %1114 = vmatprep.subr.mxu0 %v816
    %1115 = vmatpush1.msra.mxu0 %v815
    %1116 = vmatprep.mubr.f32.mxu0 %v559
    %1117 = vmatmul.mubr.f32.gmra.mrb[0].mxu0 %v557
    %v1118 = vpop.f32.mrb[0].mxu0
    %v1119 = vadd.f32 %v1048, %v1118
    %v1120 = vpop.f32.mrb[0].mxu0
    %v1121 = vadd.f32 %v1050, %v1120
    %1122 = vdwg.mxu0
    %1123 = vst [vmem:[#allocation8] sm:$0xff] %v977
    %1124 = vst [vmem:[#allocation8 + $0x8] sm:$0xff] %v979
    %1125 = vst [vmem:[#allocation8 + $0x10] sm:$0xff] %v1119
    %1126 = vst [vmem:[#allocation8 + $0x18] sm:$0xff] %v1121
    // Predicated region
    $region34: #{tpu_custom_call.1} parent=1 // pred_check
      _
    $region35: #{tpu_custom_call.1} parent=1 // pred_check_branch
      %1128 = sbr.rel (0) target = $region37
    $region36: #{tpu_custom_call.1} parent=1 // pred_region
      %s1130 = ssub.s32 512, 512
      %1131 = vsyncadd [#allocation4], %s1130
      %s1133 = sshll.u32 [#allocation8], 4
      %s1134 = int_to_ptr.vmem [resolvable:$true] %s1133
      %1136 = dma.vmem_to_hbm [thread:$0]  %s1134, 512, %s5, [#allocation4]
    $region37: #{tpu_custom_call.1} parent=1 // pred_fallthru
      _
    // Predicated region
    $region38: #{tpu_custom_call.1} parent=1 // pred_check
      _
    $region39: #{tpu_custom_call.1} parent=1 // pred_check_branch
      %1138 = sbr.rel (0) target = $region41
    $region40: #{tpu_custom_call.1} parent=1 // pred_region
      %1139 = dma.done [#allocation4], 512
    $region41: #{tpu_custom_call.1} parent=1 // pred_fallthru
      _
    %1140 = vsyncpa [#allocation3], 1
    %1141 = vsyncpa [#allocation6], 1
    %1142 = vsyncpa [#allocation4], 1

</llo_original>
